<compile_context>
chip_gen: v5e
topology: v5e:2x2
jax: 0.10.0
libtpu: 0.0.40
codegen_flags: <defaults>
</compile_context>

<pallas_src>
import math

import jax
import jax.numpy as jnp
from jax.experimental import pallas as pl
from jax.experimental.pallas import tpu as pltpu


# --------------------------------------------------------------------------- #
# Pass 1: per-head Q / K / V projections (computed once per token).
# --------------------------------------------------------------------------- #
def _qkv_proj_kernel(x_ref, wq_ref, bq_ref, wk_ref, bk_ref, wv_ref, bv_ref,
                     q_ref, k_ref, v_ref):
    """grid = (batch b, seq-tile si, head h).  Weights are const-resident blocks."""
    h = pl.program_id(2)
    x = x_ref[0]                                                       # (TS, D) bf16
    q = jnp.dot(x, wq_ref[h], preferred_element_type=jnp.float32) + bq_ref[h]
    k = jnp.dot(x, wk_ref[h], preferred_element_type=jnp.float32) + bk_ref[h]
    v = jnp.dot(x, wv_ref[h], preferred_element_type=jnp.float32) + bv_ref[h]
    q_ref[0, 0] = q.astype(q_ref.dtype)                                # (TS, d_k)
    k_ref[0, 0] = k.astype(k_ref.dtype)
    v_ref[0, 0] = v.astype(v_ref.dtype)


# --------------------------------------------------------------------------- #
# Pass 2: flash attention + Wo + residual/LN1 + FFN + residual/LN2.
# --------------------------------------------------------------------------- #
def _flash_ffn_kernel(
    x_ref, q_ref, k_ref, v_ref,
    wo_ref, bo_ref, g1_ref, be1_ref, w1_ref, b1_ref, w2_ref, b2_ref,
    g2_ref, be2_ref,
    o_ref,
    m_scr, l_scr, acc_scr, attn_scr,
):
    """grid = (batch b, q-tile qi, head h, kv-tile ki)."""
    h = pl.program_id(2)
    ki = pl.program_id(3)
    last_h = pl.num_programs(2) - 1
    last_k = pl.num_programs(3) - 1
    eps = 1e-5

    # ---- per-(q-tile, head) init of the flash state ----
    @pl.when(ki == 0)
    def _():
        m_scr[...] = jnp.full(m_scr.shape, -jnp.inf, m_scr.dtype)
        l_scr[...] = jnp.zeros(l_scr.shape, l_scr.dtype)
        acc_scr[...] = jnp.zeros(acc_scr.shape, acc_scr.dtype)

    # ---- per-q-tile init of the attention-output accumulator ----
    @pl.when(jnp.logical_and(h == 0, ki == 0))
    def _():
        attn_scr[...] = jnp.zeros(attn_scr.shape, attn_scr.dtype)

    # ---- flash (online softmax) update; Q/K/V already projected & scaled ----
    q = q_ref[0, 0]                                                    # (TQ, d_k) bf16
    k = k_ref[0, 0]                                                    # (TK, d_k) bf16
    v = v_ref[0, 0]                                                    # (TK, d_k) bf16
    s = jax.lax.dot_general(q, k, (((1,), (1,)), ((), ())),
                            preferred_element_type=jnp.float32)        # (TQ, TK)
    m_prev = m_scr[...]
    m_new = jnp.maximum(m_prev, s.max(axis=-1, keepdims=True))
    alpha = jnp.exp(m_prev - m_new)
    p = jnp.exp(s - m_new)
    l_scr[...] = alpha * l_scr[...] + p.sum(axis=-1, keepdims=True)
    acc_scr[...] = alpha * acc_scr[...] + jnp.dot(
        p.astype(jnp.bfloat16), v, preferred_element_type=jnp.float32)
    m_scr[...] = m_new

    # ---- last kv-tile for this head: fold the head into the Wo projection ----
    @pl.when(ki == last_k)
    def _():
        ctx = acc_scr[...] * pl.reciprocal(l_scr[...], approx=True)    # (TQ, d_k)
        attn_scr[...] += jnp.dot(ctx.astype(jnp.bfloat16), wo_ref[h],
                                 preferred_element_type=jnp.float32)   # (TQ, D)

    # ---- last head & kv-tile: residual + LN1 + FFN + residual + LN2 ----
    @pl.when(jnp.logical_and(h == last_h, ki == last_k))
    def _():
        x = x_ref[0]                                                   # (TQ, D) f32
        h1 = x + attn_scr[...] + bo_ref[...]
        mu1 = jnp.mean(h1, axis=-1, keepdims=True)
        var1 = jnp.mean(jnp.square(h1 - mu1), axis=-1, keepdims=True)
        x1 = (h1 - mu1) * jax.lax.rsqrt(var1 + eps) * g1_ref[...] + be1_ref[...]

        ff = jnp.dot(x1.astype(jnp.bfloat16), w1_ref[...],
                     preferred_element_type=jnp.float32) + b1_ref[...]
        ff = jnp.maximum(ff, 0.0)
        ff = jnp.dot(ff.astype(jnp.bfloat16), w2_ref[...],
                     preferred_element_type=jnp.float32) + b2_ref[...]

        h2 = x1 + ff
        mu2 = jnp.mean(h2, axis=-1, keepdims=True)
        var2 = jnp.mean(jnp.square(h2 - mu2), axis=-1, keepdims=True)
        out = (h2 - mu2) * jax.lax.rsqrt(var2 + eps) * g2_ref[...] + be2_ref[...]
        o_ref[0] = out.astype(o_ref.dtype)


# --------------------------------------------------------------------------- #
# Wrapper
# --------------------------------------------------------------------------- #
def _pick_tile(n, candidates=(512, 256, 128, 64, 32, 16, 8)):
    if n <= candidates[0]:
        return n
    for t in candidates:
        if n % t == 0:
            return t
    return n  # fall back to the full (unblocked) dimension


def _vmem_limit_bytes(resident_bytes):
    """Resident-block estimate + slack, clamped to 3/4 of physical VMEM."""
    try:
        cap = int(pltpu.get_tpu_info().vmem_capacity_bytes)
    except Exception:
        cap = 64 << 20  # conservative: v7x per-TensorCore VMEM
    return int(min(max(resident_bytes + (4 << 20), 16 << 20), (cap * 3) // 4))


def transformer_encoder_layer(x, kp, *, num_heads,
                              tile_q=None, tile_k=None, tile_s=None):
    """x: (B, S, D) float32.  kp: kernel params from prepare_params()."""
    B, S, D = x.shape
    H = num_heads
    assert D % H == 0
    d_k = D // H
    d_ff = kp["w1"].shape[1]
    assert kp["wq"].shape == (H, D, d_k)

    TS = tile_s or _pick_tile(S)
    TQ = tile_q or _pick_tile(S)
    TK = tile_k or _pick_tile(S)
    assert S % TS == 0 and S % TQ == 0 and S % TK == 0, "seq len must divide tiles"

    x_bf16 = x.astype(jnp.bfloat16)  # half-width stream for the projection pass

    # ----------------------- pass 1: Q/K/V projection ----------------------- #
    def const_a(shape):
        return pl.BlockSpec(shape, lambda b, si, h: (0,) * len(shape))

    resident_a = (
        2 * 3 * H * D * d_k * 2 + 3 * H * d_k * 4   # Wq/Wk/Wv (+dbl-buf) + biases
        + 2 * TS * D * 2                            # x tile (bf16, double-buffered)
        + 3 * 2 * TS * d_k * 2                      # q/k/v out tiles (double-buffered)
    )
    q, k, v = pl.pallas_call(
        _qkv_proj_kernel,
        out_shape=(jax.ShapeDtypeStruct((B, H, S, d_k), jnp.bfloat16),) * 3,
        grid_spec=pltpu.PrefetchScalarGridSpec(
            num_scalar_prefetch=0,
            grid=(B, S // TS, H),
            in_specs=[
                pl.BlockSpec((1, TS, D), lambda b, si, h: (b, si, 0)),  # x (bf16)
                const_a((H, D, d_k)), const_a((H, 1, d_k)),             # Wq, bq (scaled)
                const_a((H, D, d_k)), const_a((H, 1, d_k)),             # Wk, bk
                const_a((H, D, d_k)), const_a((H, 1, d_k)),             # Wv, bv
            ],
            out_specs=[
                pl.BlockSpec((1, 1, TS, d_k), lambda b, si, h: (b, h, si, 0))
            ] * 3,
        ),
        compiler_params=pltpu.CompilerParams(
            dimension_semantics=("parallel", "parallel", "arbitrary"),
            vmem_limit_bytes=_vmem_limit_bytes(resident_a),
        ),
    )(x_bf16, kp["wq"], kp["bq"], kp["wk"], kp["bk"], kp["wv"], kp["bv"])

    # ------------------ pass 2: flash attention + Wo + FFN ------------------ #
    def const_b(shape):
        return pl.BlockSpec(shape, lambda b, qi, h, ki: (0,) * len(shape))

    in_specs = [
        pl.BlockSpec((1, TQ, D), lambda b, qi, h, ki: (b, qi, 0)),        # x (residual)
        pl.BlockSpec((1, 1, TQ, d_k), lambda b, qi, h, ki: (b, h, qi, 0)),  # Q
        pl.BlockSpec((1, 1, TK, d_k), lambda b, qi, h, ki: (b, h, ki, 0)),  # K
        pl.BlockSpec((1, 1, TK, d_k), lambda b, qi, h, ki: (b, h, ki, 0)),  # V
        const_b((H, d_k, D)),           # Wo (per-head rows), bf16, resident
        const_b((1, D)),                # bo
        const_b((1, D)), const_b((1, D)),   # gamma1, beta1
        const_b((D, d_ff)),             # W1, bf16, resident
        const_b((1, d_ff)),             # b1
        const_b((d_ff, D)),             # W2, bf16, resident
        const_b((1, D)),                # b2
        const_b((1, D)), const_b((1, D)),   # gamma2, beta2
    ]
    out_spec = pl.BlockSpec((1, TQ, D), lambda b, qi, h, ki: (b, qi, 0))

    scratch = [
        pltpu.VMEM((TQ, 1), jnp.float32),     # running max
        pltpu.VMEM((TQ, 1), jnp.float32),     # running softmax denominator
        pltpu.VMEM((TQ, d_k), jnp.float32),   # running weighted-V numerator
        pltpu.VMEM((TQ, D), jnp.float32),     # attention-output accumulator
    ]

    resident_b = (
        2 * (2 * TQ * D * 4)                          # x residual + out (f32, dbl-buf)
        + 2 * (TQ + 2 * TK) * d_k * 2                 # Q/K/V tiles (bf16, dbl-buf)
        + 2 * (H * d_k * D + D * d_ff + d_ff * D) * 2 # Wo/W1/W2 (bf16, dbl-buf worst case)
        + (d_ff + 8 * D) * 4                          # biases + LN params
        + (2 * TQ + TQ * d_k + TQ * D) * 4            # scratch
    )

    return pl.pallas_call(
        _flash_ffn_kernel,
        out_shape=jax.ShapeDtypeStruct((B, S, D), x.dtype),
        grid_spec=pltpu.PrefetchScalarGridSpec(
            num_scalar_prefetch=0,
            grid=(B, S // TQ, H, S // TK),
            in_specs=in_specs,
            out_specs=out_spec,
            scratch_shapes=scratch,
        ),
        compiler_params=pltpu.CompilerParams(
            dimension_semantics=("parallel", "parallel", "arbitrary", "arbitrary"),
            vmem_limit_bytes=_vmem_limit_bytes(resident_b),
        ),
    )(
        x, q, k, v,
        kp["wo"], kp["bo"], kp["g1"], kp["be1"],
        kp["w1"], kp["b1"], kp["w2"], kp["b2"], kp["g2"], kp["be2"],
    )


# --------------------------------------------------------------------------- #
# Parameters
# --------------------------------------------------------------------------- #
def init_params(key, d_model, d_ff):
    """Synthetic PyTorch-style init. Linear weights stored (in, out): y = x @ W + b."""
    ks = jax.random.split(key, 6)

    def lin(k, fan_in, fan_out):
        bound = 1.0 / math.sqrt(fan_in)
        kw, kb = jax.random.split(k)
        w = jax.random.uniform(kw, (fan_in, fan_out), jnp.float32, -bound, bound)
        b = jax.random.uniform(kb, (1, fan_out), jnp.float32, -bound, bound)
        return w, b

    wq, bq = lin(ks[0], d_model, d_model)
    wk, bk = lin(ks[1], d_model, d_model)
    wv, bv = lin(ks[2], d_model, d_model)
    wo, bo = lin(ks[3], d_model, d_model)
    w1, b1 = lin(ks[4], d_model, d_ff)
    w2, b2 = lin(ks[5], d_ff, d_model)
    return dict(
        wq=wq, bq=bq, wk=wk, bk=bk, wv=wv, bv=bv, wo=wo, bo=bo,
        w1=w1, b1=b1, w2=w2, b2=b2,
        g1=jnp.ones((1, d_model), jnp.float32), be1=jnp.zeros((1, d_model), jnp.float32),
        g2=jnp.ones((1, d_model), jnp.float32), be2=jnp.zeros((1, d_model), jnp.float32),
    )


def prepare_params(p, num_heads):
    """Kernel layouts: per-head (H, D, d_k) Q/K/V weights, (H, d_k, D) Wo,
    1/sqrt(d_k) folded into Wq/bq, matmul weights cast to bf16."""
    D = p["wq"].shape[0]
    H = num_heads
    d_k = D // H
    scale = 1.0 / math.sqrt(d_k)

    def heads_cols(w):                          # (D, D) -> (H, D, d_k)
        return w.reshape(D, H, d_k).transpose(1, 0, 2)

    def heads_bias(b):                          # (1, D) -> (H, 1, d_k)
        return b.reshape(H, 1, d_k)

    return dict(
        wq=(heads_cols(p["wq"]) * scale).astype(jnp.bfloat16),
        bq=(heads_bias(p["bq"]) * scale).astype(jnp.float32),
        wk=heads_cols(p["wk"]).astype(jnp.bfloat16),
        bk=heads_bias(p["bk"]).astype(jnp.float32),
        wv=heads_cols(p["wv"]).astype(jnp.bfloat16),
        bv=heads_bias(p["bv"]).astype(jnp.float32),
        wo=p["wo"].reshape(H, d_k, D).astype(jnp.bfloat16),
        bo=p["bo"].astype(jnp.float32),
        g1=p["g1"], be1=p["be1"],
        w1=p["w1"].astype(jnp.bfloat16), b1=p["b1"],
        w2=p["w2"].astype(jnp.bfloat16), b2=p["b2"],
        g2=p["g2"], be2=p["be2"],
    )


# --------------------------------------------------------------------------- #
# Pure-JAX reference (PyTorch forward, eval mode, mask=None)
# --------------------------------------------------------------------------- #
def reference(x, p, num_heads):
    B, S, D = x.shape
    d_k = D // num_heads

    def mha(x):
        q = x @ p["wq"] + p["bq"]
        k = x @ p["wk"] + p["bk"]
        v = x @ p["wv"] + p["bv"]

        def split(t):
            return t.reshape(B, S, num_heads, d_k).transpose(0, 2, 1, 3)

        q, k, v = split(q), split(k), split(v)
        s = jnp.einsum("bhqd,bhkd->bhqk", q, k) / math.sqrt(d_k)
        a = jax.nn.softmax(s, axis=-1)
        o = jnp.einsum("bhqk,bhkd->bhqd", a, v)
        o = o.transpose(0, 2, 1, 3).reshape(B, S, D)
        return o @ p["wo"] + p["bo"]

    def ln(h, g, b):
        mu = h.mean(-1, keepdims=True)
        var = ((h - mu) ** 2).mean(-1, keepdims=True)
        return (h - mu) / jnp.sqrt(var + 1e-5) * g + b

    x1 = ln(x + mha(x), p["g1"], p["be1"])
    ff = jnp.maximum(x1 @ p["w1"] + p["b1"], 0.0) @ p["w2"] + p["b2"]
    return ln(x1 + ff, p["g2"], p["be2"])


if __name__ == "__main__":
    B, S, D, H, d_ff = 2, 8, 32, 4, 64
    key = jax.random.PRNGKey(0)
    kx, kw = jax.random.split(key)
    x = jax.random.normal(kx, (B, S, D), jnp.float32)
    params = init_params(kw, D, d_ff)
    kparams = prepare_params(params, H)

    out = transformer_encoder_layer(x, kparams, num_heads=H)
    out = jax.block_until_ready(out)

    ref = reference(x, params, H)
    err = float(jnp.max(jnp.abs(out - ref)))
    assert out.shape == (B, S, D)
    # bf16 weights/activations + approx reciprocal -> loosened tolerance.
    assert jnp.allclose(out, ref, atol=2e-2, rtol=2e-2), f"max abs err {err}"
    print("KERNEL_OK")
</pallas_src>

<mosaic_0001>
module attributes {stable_mosaic.version = 11 : i64} {
  func.func @_qkv_proj_kernel(%arg0: i32, %arg1: i32, %arg2: i32, %arg3: memref<1x8x32xbf16, #tpu.memory_space<vmem>>, %arg4: memref<4x32x8xbf16, #tpu.memory_space<vmem>>, %arg5: memref<4x1x8xf32, #tpu.memory_space<vmem>>, %arg6: memref<4x32x8xbf16, #tpu.memory_space<vmem>>, %arg7: memref<4x1x8xf32, #tpu.memory_space<vmem>>, %arg8: memref<4x32x8xbf16, #tpu.memory_space<vmem>>, %arg9: memref<4x1x8xf32, #tpu.memory_space<vmem>>, %arg10: memref<1x1x8x8xbf16, #tpu.memory_space<vmem>>, %arg11: memref<1x1x8x8xbf16, #tpu.memory_space<vmem>>, %arg12: memref<1x1x8x8xbf16, #tpu.memory_space<vmem>>) attributes {dimension_semantics = [#tpu.dimension_semantics<parallel>, #tpu.dimension_semantics<parallel>, #tpu.dimension_semantics<arbitrary>], iteration_bounds = array<i64: 2, 1, 4>, scalar_prefetch = 0 : i64, scratch_operands = 0 : i64, tpu.core_type = #tpu.core_type<tc>, window_params = [{transform_indices = @transform_0, window_bounds = array<i64: 1, 8, 32>}, {pipeline_mode = #tpu.pipeline_mode<synchronous>, transform_indices = @transform_1, window_bounds = array<i64: 4, 32, 8>}, {pipeline_mode = #tpu.pipeline_mode<synchronous>, transform_indices = @transform_2, window_bounds = array<i64: 4, 1, 8>}, {pipeline_mode = #tpu.pipeline_mode<synchronous>, transform_indices = @transform_3, window_bounds = array<i64: 4, 32, 8>}, {pipeline_mode = #tpu.pipeline_mode<synchronous>, transform_indices = @transform_4, window_bounds = array<i64: 4, 1, 8>}, {pipeline_mode = #tpu.pipeline_mode<synchronous>, transform_indices = @transform_5, window_bounds = array<i64: 4, 32, 8>}, {pipeline_mode = #tpu.pipeline_mode<synchronous>, transform_indices = @transform_6, window_bounds = array<i64: 4, 1, 8>}, {transform_indices = @transform_7, window_bounds = array<i64: 1, 1, 8, 8>}, {transform_indices = @transform_8, window_bounds = array<i64: 1, 1, 8, 8>}, {transform_indices = @transform_9, window_bounds = array<i64: 1, 1, 8, 8>}]} {
    %c0 = arith.constant 0 : index
    %c0_0 = arith.constant 0 : index
    %c0_1 = arith.constant 0 : index
    %0 = vector.load %arg3[%c0, %c0_0, %c0_1] : memref<1x8x32xbf16, #tpu.memory_space<vmem>>, vector<1x8x32xbf16>
    %1 = vector.shape_cast %0 : vector<1x8x32xbf16> to vector<8x32xbf16>
    %2 = arith.index_cast %arg2 : i32 to index
    %c0_2 = arith.constant 0 : index
    %c0_3 = arith.constant 0 : index
    %3 = vector.load %arg4[%2, %c0_2, %c0_3] : memref<4x32x8xbf16, #tpu.memory_space<vmem>>, vector<1x32x8xbf16>
    %4 = vector.shape_cast %3 : vector<1x32x8xbf16> to vector<32x8xbf16>
    %cst = arith.constant dense<0.000000e+00> : vector<8x8xf32>
    %5 = tpu.matmul %1, %4, %cst {dimension_numbers = #tpu.dot_dimension_numbers<[1], [0], [0], [1], [0, 0, 1, 1], [], []>} : vector<8x32xbf16>, vector<32x8xbf16>, vector<8x8xf32> -> vector<8x8xf32>
    %6 = arith.index_cast %arg2 : i32 to index
    %c0_4 = arith.constant 0 : index
    %c0_5 = arith.constant 0 : index
    %7 = vector.load %arg5[%6, %c0_4, %c0_5] : memref<4x1x8xf32, #tpu.memory_space<vmem>>, vector<1x1x8xf32>
    %8 = vector.shape_cast %7 : vector<1x1x8xf32> to vector<1x8xf32>
    %9 = vector.broadcast %8 : vector<1x8xf32> to vector<8x8xf32>
    %10 = arith.addf %5, %9 : vector<8x8xf32>
    %11 = arith.index_cast %arg2 : i32 to index
    %c0_6 = arith.constant 0 : index
    %c0_7 = arith.constant 0 : index
    %12 = vector.load %arg6[%11, %c0_6, %c0_7] : memref<4x32x8xbf16, #tpu.memory_space<vmem>>, vector<1x32x8xbf16>
    %13 = vector.shape_cast %12 : vector<1x32x8xbf16> to vector<32x8xbf16>
    %cst_8 = arith.constant dense<0.000000e+00> : vector<8x8xf32>
    %14 = tpu.matmul %1, %13, %cst_8 {dimension_numbers = #tpu.dot_dimension_numbers<[1], [0], [0], [1], [0, 0, 1, 1], [], []>} : vector<8x32xbf16>, vector<32x8xbf16>, vector<8x8xf32> -> vector<8x8xf32>
    %15 = arith.index_cast %arg2 : i32 to index
    %c0_9 = arith.constant 0 : index
    %c0_10 = arith.constant 0 : index
    %16 = vector.load %arg7[%15, %c0_9, %c0_10] : memref<4x1x8xf32, #tpu.memory_space<vmem>>, vector<1x1x8xf32>
    %17 = vector.shape_cast %16 : vector<1x1x8xf32> to vector<1x8xf32>
    %18 = vector.broadcast %17 : vector<1x8xf32> to vector<8x8xf32>
    %19 = arith.addf %14, %18 : vector<8x8xf32>
    %20 = arith.index_cast %arg2 : i32 to index
    %c0_11 = arith.constant 0 : index
    %c0_12 = arith.constant 0 : index
    %21 = vector.load %arg8[%20, %c0_11, %c0_12] : memref<4x32x8xbf16, #tpu.memory_space<vmem>>, vector<1x32x8xbf16>
    %22 = vector.shape_cast %21 : vector<1x32x8xbf16> to vector<32x8xbf16>
    %cst_13 = arith.constant dense<0.000000e+00> : vector<8x8xf32>
    %23 = tpu.matmul %1, %22, %cst_13 {dimension_numbers = #tpu.dot_dimension_numbers<[1], [0], [0], [1], [0, 0, 1, 1], [], []>} : vector<8x32xbf16>, vector<32x8xbf16>, vector<8x8xf32> -> vector<8x8xf32>
    %24 = arith.index_cast %arg2 : i32 to index
    %c0_14 = arith.constant 0 : index
    %c0_15 = arith.constant 0 : index
    %25 = vector.load %arg9[%24, %c0_14, %c0_15] : memref<4x1x8xf32, #tpu.memory_space<vmem>>, vector<1x1x8xf32>
    %26 = vector.shape_cast %25 : vector<1x1x8xf32> to vector<1x8xf32>
    %27 = vector.broadcast %26 : vector<1x8xf32> to vector<8x8xf32>
    %28 = arith.addf %23, %27 : vector<8x8xf32>
    %29 = arith.truncf %10 : vector<8x8xf32> to vector<8x8xbf16>
    %c0_16 = arith.constant 0 : index
    %c0_17 = arith.constant 0 : index
    %c0_18 = arith.constant 0 : index
    %c0_19 = arith.constant 0 : index
    %30 = vector.load %arg10[%c0_16, %c0_17, %c0_18, %c0_19] : memref<1x1x8x8xbf16, #tpu.memory_space<vmem>>, vector<1x1x8x8xbf16>
    %31 = vector.shape_cast %30 : vector<1x1x8x8xbf16> to vector<8x8xbf16>
    %32 = vector.shape_cast %29 : vector<8x8xbf16> to vector<1x1x8x8xbf16>
    tpu.vector_store %arg10[%c0_16, %c0_17, %c0_18, %c0_19], %32 {strides = array<i32>} : memref<1x1x8x8xbf16, #tpu.memory_space<vmem>>, vector<1x1x8x8xbf16>,
    %33 = arith.truncf %19 : vector<8x8xf32> to vector<8x8xbf16>
    %c0_20 = arith.constant 0 : index
    %c0_21 = arith.constant 0 : index
    %c0_22 = arith.constant 0 : index
    %c0_23 = arith.constant 0 : index
    %34 = vector.load %arg11[%c0_20, %c0_21, %c0_22, %c0_23] : memref<1x1x8x8xbf16, #tpu.memory_space<vmem>>, vector<1x1x8x8xbf16>
    %35 = vector.shape_cast %34 : vector<1x1x8x8xbf16> to vector<8x8xbf16>
    %36 = vector.shape_cast %33 : vector<8x8xbf16> to vector<1x1x8x8xbf16>
    tpu.vector_store %arg11[%c0_20, %c0_21, %c0_22, %c0_23], %36 {strides = array<i32>} : memref<1x1x8x8xbf16, #tpu.memory_space<vmem>>, vector<1x1x8x8xbf16>,
    %37 = arith.truncf %28 : vector<8x8xf32> to vector<8x8xbf16>
    %c0_24 = arith.constant 0 : index
    %c0_25 = arith.constant 0 : index
    %c0_26 = arith.constant 0 : index
    %c0_27 = arith.constant 0 : index
    %38 = vector.load %arg12[%c0_24, %c0_25, %c0_26, %c0_27] : memref<1x1x8x8xbf16, #tpu.memory_space<vmem>>, vector<1x1x8x8xbf16>
    %39 = vector.shape_cast %38 : vector<1x1x8x8xbf16> to vector<8x8xbf16>
    %40 = vector.shape_cast %37 : vector<8x8xbf16> to vector<1x1x8x8xbf16>
    tpu.vector_store %arg12[%c0_24, %c0_25, %c0_26, %c0_27], %40 {strides = array<i32>} : memref<1x1x8x8xbf16, #tpu.memory_space<vmem>>, vector<1x1x8x8xbf16>,
    return
  }
  func.func @transform_0(%arg0: i32, %arg1: i32, %arg2: i32) -> (i32, i32, i32) {
    %c0_i32 = arith.constant 0 : i32
    %c0_i32_0 = arith.constant 0 : i32
    return %arg0, %arg1, %c0_i32 : i32, i32, i32
  }
  func.func @transform_1(%arg0: i32, %arg1: i32, %arg2: i32) -> (i32, i32, i32) {
    %c0_i32 = arith.constant 0 : i32
    %c0_i32_0 = arith.constant 0 : i32
    %c0_i32_1 = arith.constant 0 : i32
    %c0_i32_2 = arith.constant 0 : i32
    return %c0_i32, %c0_i32_0, %c0_i32_1 : i32, i32, i32
  }
  func.func @transform_2(%arg0: i32, %arg1: i32, %arg2: i32) -> (i32, i32, i32) {
    %c0_i32 = arith.constant 0 : i32
    %c0_i32_0 = arith.constant 0 : i32
    %c0_i32_1 = arith.constant 0 : i32
    %c0_i32_2 = arith.constant 0 : i32
    return %c0_i32, %c0_i32_0, %c0_i32_1 : i32, i32, i32
  }
  func.func @transform_3(%arg0: i32, %arg1: i32, %arg2: i32) -> (i32, i32, i32) {
    %c0_i32 = arith.constant 0 : i32
    %c0_i32_0 = arith.constant 0 : i32
    %c0_i32_1 = arith.constant 0 : i32
    %c0_i32_2 = arith.constant 0 : i32
    return %c0_i32, %c0_i32_0, %c0_i32_1 : i32, i32, i32
  }
  func.func @transform_4(%arg0: i32, %arg1: i32, %arg2: i32) -> (i32, i32, i32) {
    %c0_i32 = arith.constant 0 : i32
    %c0_i32_0 = arith.constant 0 : i32
    %c0_i32_1 = arith.constant 0 : i32
    %c0_i32_2 = arith.constant 0 : i32
    return %c0_i32, %c0_i32_0, %c0_i32_1 : i32, i32, i32
  }
  func.func @transform_5(%arg0: i32, %arg1: i32, %arg2: i32) -> (i32, i32, i32) {
    %c0_i32 = arith.constant 0 : i32
    %c0_i32_0 = arith.constant 0 : i32
    %c0_i32_1 = arith.constant 0 : i32
    %c0_i32_2 = arith.constant 0 : i32
    return %c0_i32, %c0_i32_0, %c0_i32_1 : i32, i32, i32
  }
  func.func @transform_6(%arg0: i32, %arg1: i32, %arg2: i32) -> (i32, i32, i32) {
    %c0_i32 = arith.constant 0 : i32
    %c0_i32_0 = arith.constant 0 : i32
    %c0_i32_1 = arith.constant 0 : i32
    %c0_i32_2 = arith.constant 0 : i32
    return %c0_i32, %c0_i32_0, %c0_i32_1 : i32, i32, i32
  }
  func.func @transform_7(%arg0: i32, %arg1: i32, %arg2: i32) -> (i32, i32, i32, i32) {
    %c0_i32 = arith.constant 0 : i32
    %c0_i32_0 = arith.constant 0 : i32
    return %arg0, %arg2, %arg1, %c0_i32 : i32, i32, i32, i32
  }
  func.func @transform_8(%arg0: i32, %arg1: i32, %arg2: i32) -> (i32, i32, i32, i32) {
    %c0_i32 = arith.constant 0 : i32
    %c0_i32_0 = arith.constant 0 : i32
    return %arg0, %arg2, %arg1, %c0_i32 : i32, i32, i32, i32
  }
  func.func @transform_9(%arg0: i32, %arg1: i32, %arg2: i32) -> (i32, i32, i32, i32) {
    %c0_i32 = arith.constant 0 : i32
    %c0_i32_0 = arith.constant 0 : i32
    return %arg0, %arg2, %arg1, %c0_i32 : i32, i32, i32, i32
  }
}

</mosaic_0001>

<llo_original>
// kernel: tpu_custom_call.1
$region0: #{tpu_custom_call.1}
  #allocation0 [shape = 'u32[]', space=smem, size = 0x4, offset = 0x4, fixed_abs, tag = 'smem constant byte address 0x4 - core index']
  #allocation1 [shape = 'u32[72,128]{1,0:T(1,128)}', space=vmem, size = 0x9000, scoped, tag = 'internal scratch']
  %s0 = inlined_call_operand.vmem [shape: bf16[2,8,32], index: 0, kind: input, shape index: {}]
  %s1 = inlined_call_operand.vmem [shape: bf16[4,32,8], index: 1, kind: input, shape index: {}]
  %s2 = inlined_call_operand.vmem [shape: f32[4,1,8], index: 2, kind: input, shape index: {}]
  %s3 = inlined_call_operand.vmem [shape: bf16[4,32,8], index: 3, kind: input, shape index: {}]
  %s4 = inlined_call_operand.vmem [shape: f32[4,1,8], index: 4, kind: input, shape index: {}]
  %s5 = inlined_call_operand.vmem [shape: bf16[4,32,8], index: 5, kind: input, shape index: {}]
  %s6 = inlined_call_operand.vmem [shape: f32[4,1,8], index: 6, kind: input, shape index: {}]
  %s7 = inlined_call_operand.hbm [shape: bf16[2,4,8,8], index: 7, kind: output, shape index: {0}]
  %s8 = inlined_call_operand.hbm [shape: bf16[2,4,8,8], index: 8, kind: output, shape index: {1}]
  %s9 = inlined_call_operand.hbm [shape: bf16[2,4,8,8], index: 9, kind: output, shape index: {2}]
  %10 = xla_tuple %s7, %s8, %s9
  %s11 = sld [smem:[#allocation0]]
  $region77: #{tpu_custom_call.1} parent=0
    _
  %s13 = ssub.s32 1, %s11
  %s14 = scalar_select 0, %s13, %s11
  $region1: #{tpu_custom_call.1} parent=0
    #allocation2 [shape = 'u8[4096]{0}', space=vmem, size = 0x1000, scoped, tag = 'output window, operand 0']
    #allocation3 [shape = 's32[2]{0}', space=sflag, size = 0x8, scoped, tag = 'scoped memory for tpu_custom_call.1']
    #allocation4 [shape = 'u8[4096]{0}', space=vmem, size = 0x1000, scoped, tag = 'output window, operand 1']
    #allocation5 [shape = 's32[2]{0}', space=sflag, size = 0x8, scoped, tag = 'scoped memory for tpu_custom_call.1']
    #allocation6 [shape = 'u8[4096]{0}', space=vmem, size = 0x1000, scoped, tag = 'output window, operand 2']
    %15 = vsyncpa [#allocation3], 0
    %s16 = scalar_lea.sflag [#allocation3], 1
    %17 = vsyncpa %s16, 0
    %18 = vsyncpa [#allocation5], 0
    %s19 = scalar_lea.sflag [#allocation5], 1
    %20 = vsyncpa %s19, 0
    loop: start=0, step=1, limit=10
    $region2: #{tpu_custom_call.1} parent=1 // loop_pre_header
      _
    $region3: #{tpu_custom_call.1} parent=1 // loop_header
      %s22 = sphi 0, %s26
      %p23 = scmp.ge.s32.totalorder %s22, 10
      %s29 = sphi 0, %s48
      %s30 = sphi 0, %s44
      %s31 = sphi 0, %s40
      %s32 = sphi 0, %s29
      %s33 = sphi 0, %s30
      %s34 = sphi 0, %s31
      %s35 = sphi 0, %s32
      %s36 = sphi 0, %s33
      %s37 = sphi 0, %s34
      %s53 = sphi 0, %s55
      %s56 = sphi 0, %s53
      %s57 = sphi 0, %s56
      %s73 = sphi 0, %s57
      %s77 = sphi 0, %s77
      %s79 = sphi 0, %s77
      %s80 = sphi 0, %s79
      %s94 = sphi 0, %s80
      %s98 = sphi 0, %s98
      %s100 = sphi 0, %s98
      %s101 = sphi 0, %s100
      %s115 = sphi 0, %s101
      %s119 = sphi 0, %s119
      %s121 = sphi 0, %s119
      %s122 = sphi 0, %s121
      %s136 = sphi 0, %s122
      %s140 = sphi 0, %s140
      %s142 = sphi 0, %s140
      %s143 = sphi 0, %s142
      %s157 = sphi 0, %s143
      %s161 = sphi 0, %s161
      %s163 = sphi 0, %s161
      %s164 = sphi 0, %s163
      %s178 = sphi 0, %s164
      %s182 = sphi 0, %s182
      %s184 = sphi 0, %s182
      %s185 = sphi 0, %s184
      %s199 = sphi 0, %s185
      %s209 = sphi 0, %s211
      %s212 = sphi 0, %s209
      %s213 = sphi 0, %s212
      %s229 = sphi 0, %s213
      %s239 = sphi 0, %s241
      %s242 = sphi 0, %s239
      %s243 = sphi 0, %s242
      %s259 = sphi 0, %s243
      %s269 = sphi 0, %s271
      %s272 = sphi 0, %s269
      %s273 = sphi 0, %s272
      %s289 = sphi 0, %s273
    $region4: #{tpu_custom_call.1} parent=1 // loop_header_branch
      %25 = sbr.rel (%p23) target = $region8
    $region5: #{tpu_custom_call.1} parent=1 // loop_body
      %s27 = ssub.s32 %s22, 1
      %s28 = ssub.s32 %s22, 2
      %s38 = sadd.s32 1, %s31
      %p39 = scmp.ge.s32.totalorder %s38, 4
      %s40 = scalar_select %p39, 0, %s38
      %s41 = sadd.s32 1, %s30
      %s42 = scalar_select %p39, %s41, %s30
      %p43 = scmp.ge.s32.totalorder %s42, 1
      %s44 = scalar_select %p43, 0, %s42
      %s45 = sadd.s32 1, %s29
      %s46 = scalar_select %p43, %s45, %s29
      %p47 = scmp.ge.s32.totalorder %s46, 2
      %s48 = scalar_select %p47, 0, %s46
      %s49 = ssub.s32 %s29, %s48
      %s50 = ssub.s32 %s30, %s44
      %s51 = sor.u32 %s49, %s50
      %p52 = scmp.eq.s32.totalorder %s51, 0
      %s54 = sadd.s32 %s53, 1
      %s55 = scalar_select %p52, %s53, %s54
      %p58 = pneg %p52
      %p59 = scmp.eq.s32.totalorder %s22, 7
      %p60 = por %p58, %p59
      %p61 = scmp.ne.s32.totalorder %s53, %s56
      %p62 = scmp.eq.s32.totalorder %s22, 0
      %p63 = por %p61, %p62
      %p64 = scmp.ne.s32.totalorder %s53, %s56
      %p65 = scmp.eq.s32.totalorder %s27, 7
      %p66 = por %p64, %p65
      %p67 = scmp.ne.s32.totalorder %s56, %s57
      %p68 = scmp.eq.s32.totalorder %s27, 0
      %p69 = por %p67, %p68
      %p70 = scmp.ne.s32.totalorder %s56, %s57
      %p71 = scmp.eq.s32.totalorder %s28, 7
      %p72 = por %p70, %p71
      %p74 = scmp.ne.s32.totalorder %s57, %s73
      %p75 = scmp.eq.s32.totalorder %s28, 0
      %p76 = por %p74, %p75
      %s78 = sadd.s32 %s77, 1
      %p81 = scmp.eq.s32.totalorder %s22, 7
      %p82 = scmp.ne.s32.totalorder %s77, %s79
      %p83 = scmp.eq.s32.totalorder %s22, 0
      %p84 = por %p82, %p83
      %p85 = scmp.ne.s32.totalorder %s77, %s79
      %p86 = scmp.eq.s32.totalorder %s27, 7
      %p87 = por %p85, %p86
      %p88 = scmp.ne.s32.totalorder %s79, %s80
      %p89 = scmp.eq.s32.totalorder %s27, 0
      %p90 = por %p88, %p89
      %p91 = scmp.ne.s32.totalorder %s79, %s80
      %p92 = scmp.eq.s32.totalorder %s28, 7
      %p93 = por %p91, %p92
      %p95 = scmp.ne.s32.totalorder %s80, %s94
      %p96 = scmp.eq.s32.totalorder %s28, 0
      %p97 = por %p95, %p96
      %s99 = sadd.s32 %s98, 1
      %p102 = scmp.eq.s32.totalorder %s22, 7
      %p103 = scmp.ne.s32.totalorder %s98, %s100
      %p104 = scmp.eq.s32.totalorder %s22, 0
      %p105 = por %p103, %p104
      %p106 = scmp.ne.s32.totalorder %s98, %s100
      %p107 = scmp.eq.s32.totalorder %s27, 7
      %p108 = por %p106, %p107
      %p109 = scmp.ne.s32.totalorder %s100, %s101
      %p110 = scmp.eq.s32.totalorder %s27, 0
      %p111 = por %p109, %p110
      %p112 = scmp.ne.s32.totalorder %s100, %s101
      %p113 = scmp.eq.s32.totalorder %s28, 7
      %p114 = por %p112, %p113
      %p116 = scmp.ne.s32.totalorder %s101, %s115
      %p117 = scmp.eq.s32.totalorder %s28, 0
      %p118 = por %p116, %p117
      %s120 = sadd.s32 %s119, 1
      %p123 = scmp.eq.s32.totalorder %s22, 7
      %p124 = scmp.ne.s32.totalorder %s119, %s121
      %p125 = scmp.eq.s32.totalorder %s22, 0
      %p126 = por %p124, %p125
      %p127 = scmp.ne.s32.totalorder %s119, %s121
      %p128 = scmp.eq.s32.totalorder %s27, 7
      %p129 = por %p127, %p128
      %p130 = scmp.ne.s32.totalorder %s121, %s122
      %p131 = scmp.eq.s32.totalorder %s27, 0
      %p132 = por %p130, %p131
      %p133 = scmp.ne.s32.totalorder %s121, %s122
      %p134 = scmp.eq.s32.totalorder %s28, 7
      %p135 = por %p133, %p134
      %p137 = scmp.ne.s32.totalorder %s122, %s136
      %p138 = scmp.eq.s32.totalorder %s28, 0
      %p139 = por %p137, %p138
      %s141 = sadd.s32 %s140, 1
      %p144 = scmp.eq.s32.totalorder %s22, 7
      %p145 = scmp.ne.s32.totalorder %s140, %s142
      %p146 = scmp.eq.s32.totalorder %s22, 0
      %p147 = por %p145, %p146
      %p148 = scmp.ne.s32.totalorder %s140, %s142
      %p149 = scmp.eq.s32.totalorder %s27, 7
      %p150 = por %p148, %p149
      %p151 = scmp.ne.s32.totalorder %s142, %s143
      %p152 = scmp.eq.s32.totalorder %s27, 0
      %p153 = por %p151, %p152
      %p154 = scmp.ne.s32.totalorder %s142, %s143
      %p155 = scmp.eq.s32.totalorder %s28, 7
      %p156 = por %p154, %p155
      %p158 = scmp.ne.s32.totalorder %s143, %s157
      %p159 = scmp.eq.s32.totalorder %s28, 0
      %p160 = por %p158, %p159
      %s162 = sadd.s32 %s161, 1
      %p165 = scmp.eq.s32.totalorder %s22, 7
      %p166 = scmp.ne.s32.totalorder %s161, %s163
      %p167 = scmp.eq.s32.totalorder %s22, 0
      %p168 = por %p166, %p167
      %p169 = scmp.ne.s32.totalorder %s161, %s163
      %p170 = scmp.eq.s32.totalorder %s27, 7
      %p171 = por %p169, %p170
      %p172 = scmp.ne.s32.totalorder %s163, %s164
      %p173 = scmp.eq.s32.totalorder %s27, 0
      %p174 = por %p172, %p173
      %p175 = scmp.ne.s32.totalorder %s163, %s164
      %p176 = scmp.eq.s32.totalorder %s28, 7
      %p177 = por %p175, %p176
      %p179 = scmp.ne.s32.totalorder %s164, %s178
      %p180 = scmp.eq.s32.totalorder %s28, 0
      %p181 = por %p179, %p180
      %s183 = sadd.s32 %s182, 1
      %p186 = scmp.eq.s32.totalorder %s22, 7
      %p187 = scmp.ne.s32.totalorder %s182, %s184
      %p188 = scmp.eq.s32.totalorder %s22, 0
      %p189 = por %p187, %p188
      %p190 = scmp.ne.s32.totalorder %s182, %s184
      %p191 = scmp.eq.s32.totalorder %s27, 7
      %p192 = por %p190, %p191
      %p193 = scmp.ne.s32.totalorder %s184, %s185
      %p194 = scmp.eq.s32.totalorder %s27, 0
      %p195 = por %p193, %p194
      %p196 = scmp.ne.s32.totalorder %s184, %s185
      %p197 = scmp.eq.s32.totalorder %s28, 7
      %p198 = por %p196, %p197
      %p200 = scmp.ne.s32.totalorder %s185, %s199
      %p201 = scmp.eq.s32.totalorder %s28, 0
      %p202 = por %p200, %p201
      %s203 = ssub.s32 %s29, %s48
      %s204 = ssub.s32 %s31, %s40
      %s205 = sor.u32 %s203, %s204
      %s206 = ssub.s32 %s30, %s44
      %s207 = sor.u32 %s205, %s206
      %p208 = scmp.eq.s32.totalorder %s207, 0
      %s210 = sadd.s32 %s209, 1
      %s211 = scalar_select %p208, %s209, %s210
      %p214 = pneg %p208
      %p215 = scmp.eq.s32.totalorder %s22, 7
      %p216 = por %p214, %p215
      %p217 = scmp.ne.s32.totalorder %s209, %s212
      %p218 = scmp.eq.s32.totalorder %s22, 0
      %p219 = por %p217, %p218
      %p220 = scmp.ne.s32.totalorder %s209, %s212
      %p221 = scmp.eq.s32.totalorder %s27, 7
      %p222 = por %p220, %p221
      %p223 = scmp.ne.s32.totalorder %s212, %s213
      %p224 = scmp.eq.s32.totalorder %s27, 0
      %p225 = por %p223, %p224
      %p226 = scmp.ne.s32.totalorder %s212, %s213
      %p227 = scmp.eq.s32.totalorder %s28, 7
      %p228 = por %p226, %p227
      %p230 = scmp.ne.s32.totalorder %s213, %s229
      %p231 = scmp.eq.s32.totalorder %s28, 0
      %p232 = por %p230, %p231
      %s233 = ssub.s32 %s29, %s48
      %s234 = ssub.s32 %s31, %s40
      %s235 = sor.u32 %s233, %s234
      %s236 = ssub.s32 %s30, %s44
      %s237 = sor.u32 %s235, %s236
      %p238 = scmp.eq.s32.totalorder %s237, 0
      %s240 = sadd.s32 %s239, 1
      %s241 = scalar_select %p238, %s239, %s240
      %p244 = pneg %p238
      %p245 = scmp.eq.s32.totalorder %s22, 7
      %p246 = por %p244, %p245
      %p247 = scmp.ne.s32.totalorder %s239, %s242
      %p248 = scmp.eq.s32.totalorder %s22, 0
      %p249 = por %p247, %p248
      %p250 = scmp.ne.s32.totalorder %s239, %s242
      %p251 = scmp.eq.s32.totalorder %s27, 7
      %p252 = por %p250, %p251
      %p253 = scmp.ne.s32.totalorder %s242, %s243
      %p254 = scmp.eq.s32.totalorder %s27, 0
      %p255 = por %p253, %p254
      %p256 = scmp.ne.s32.totalorder %s242, %s243
      %p257 = scmp.eq.s32.totalorder %s28, 7
      %p258 = por %p256, %p257
      %p260 = scmp.ne.s32.totalorder %s243, %s259
      %p261 = scmp.eq.s32.totalorder %s28, 0
      %p262 = por %p260, %p261
      %s263 = ssub.s32 %s29, %s48
      %s264 = ssub.s32 %s31, %s40
      %s265 = sor.u32 %s263, %s264
      %s266 = ssub.s32 %s30, %s44
      %s267 = sor.u32 %s265, %s266
      %p268 = scmp.eq.s32.totalorder %s267, 0
      %s270 = sadd.s32 %s269, 1
      %s271 = scalar_select %p268, %s269, %s270
      %p274 = pneg %p268
      %p275 = scmp.eq.s32.totalorder %s22, 7
      %p276 = por %p274, %p275
      %p277 = scmp.ne.s32.totalorder %s269, %s272
      %p278 = scmp.eq.s32.totalorder %s22, 0
      %p279 = por %p277, %p278
      %p280 = scmp.ne.s32.totalorder %s269, %s272
      %p281 = scmp.eq.s32.totalorder %s27, 7
      %p282 = por %p280, %p281
      %p283 = scmp.ne.s32.totalorder %s272, %s273
      %p284 = scmp.eq.s32.totalorder %s27, 0
      %p285 = por %p283, %p284
      %p286 = scmp.ne.s32.totalorder %s272, %s273
      %p287 = scmp.eq.s32.totalorder %s28, 7
      %p288 = por %p286, %p287
      %p290 = scmp.ne.s32.totalorder %s273, %s289
      %p291 = scmp.eq.s32.totalorder %s28, 0
      %p292 = por %p290, %p291
      %p293 = scmp.le.s32.totalorder 1, %s22
      %p294 = scmp.lt.s32.totalorder %s22, 9
      %p295 = pnand %p293, %p294
      %p296 = pneg %p295
      // Predicated region
      $region9: #{tpu_custom_call.1} parent=5 // pred_check
        _
      $region10: #{tpu_custom_call.1} parent=5 // pred_check_branch
        %298 = sbr.rel (%p295) target = $region12
      $region11: #{tpu_custom_call.1} parent=5 // pred_region
        %s299 = ssub.s32 %s22, 1
        // Predicated region
        $region13: #{tpu_custom_call.1} parent=11 // pred_check
          %p300 = pneg %p90
        $region14: #{tpu_custom_call.1} parent=11 // pred_check_branch
          %302 = sbr.rel (%p300) target = $region16
        $region15: #{tpu_custom_call.1} parent=11 // pred_region
          _
        $region16: #{tpu_custom_call.1} parent=11 // pred_fallthru
          _
        // Predicated region
        $region17: #{tpu_custom_call.1} parent=11 // pred_check
          %p303 = pneg %p111
        $region18: #{tpu_custom_call.1} parent=11 // pred_check_branch
          %305 = sbr.rel (%p303) target = $region20
        $region19: #{tpu_custom_call.1} parent=11 // pred_region
          _
        $region20: #{tpu_custom_call.1} parent=11 // pred_fallthru
          _
        // Predicated region
        $region21: #{tpu_custom_call.1} parent=11 // pred_check
          %p306 = pneg %p132
        $region22: #{tpu_custom_call.1} parent=11 // pred_check_branch
          %308 = sbr.rel (%p306) target = $region24
        $region23: #{tpu_custom_call.1} parent=11 // pred_region
          _
        $region24: #{tpu_custom_call.1} parent=11 // pred_fallthru
          _
        // Predicated region
        $region25: #{tpu_custom_call.1} parent=11 // pred_check
          %p309 = pneg %p153
        $region26: #{tpu_custom_call.1} parent=11 // pred_check_branch
          %311 = sbr.rel (%p309) target = $region28
        $region27: #{tpu_custom_call.1} parent=11 // pred_region
          _
        $region28: #{tpu_custom_call.1} parent=11 // pred_fallthru
          _
        // Predicated region
        $region29: #{tpu_custom_call.1} parent=11 // pred_check
          %p312 = pneg %p174
        $region30: #{tpu_custom_call.1} parent=11 // pred_check_branch
          %314 = sbr.rel (%p312) target = $region32
        $region31: #{tpu_custom_call.1} parent=11 // pred_region
          _
        $region32: #{tpu_custom_call.1} parent=11 // pred_fallthru
          _
        // Predicated region
        $region33: #{tpu_custom_call.1} parent=11 // pred_check
          %p315 = pneg %p195
        $region34: #{tpu_custom_call.1} parent=11 // pred_check_branch
          %317 = sbr.rel (%p315) target = $region36
        $region35: #{tpu_custom_call.1} parent=11 // pred_region
          _
        $region36: #{tpu_custom_call.1} parent=11 // pred_fallthru
          _
      $region12: #{tpu_custom_call.1} parent=5 // pred_fallthru
        _
      %p318 = scmp.lt.s32.totalorder %s22, 8
      // Predicated region
      $region37: #{tpu_custom_call.1} parent=5 // pred_check
        %p319 = pneg %p318
      $region38: #{tpu_custom_call.1} parent=5 // pred_check_branch
        %321 = sbr.rel (%p319) target = $region40
      $region39: #{tpu_custom_call.1} parent=5 // pred_region
        // Predicated region
        $region41: #{tpu_custom_call.1} parent=39 // pred_check
          %p322 = pneg %p63
        $region42: #{tpu_custom_call.1} parent=39 // pred_check_branch
          %324 = sbr.rel (%p322) target = $region44
        $region43: #{tpu_custom_call.1} parent=39 // pred_region
          %p325 = scmp.lt.s32.totalorder %s29, 1
          %s326 = scalar_select %p325, %s29, 1
          %p327 = scmp.lt.s32.totalorder %s30, 0
          %s328 = scalar_select %p327, %s30, 0
          %s329 = sadd.s32 %s328, %s326
          %s330 = smul.addr %s329, 4
          %s331 = scalar_lea.vmem %s0, %s330
        $region44: #{tpu_custom_call.1} parent=39 // pred_fallthru
          _
      $region40: #{tpu_custom_call.1} parent=5 // pred_fallthru
        _
      %p332 = scmp.le.s32.totalorder 1, %s22
      %p333 = scmp.lt.s32.totalorder %s22, 9
      %p334 = pnand %p332, %p333
      %p335 = pneg %p334
      // Predicated region
      $region45: #{tpu_custom_call.1} parent=5 // pred_check
        _
      $region46: #{tpu_custom_call.1} parent=5 // pred_check_branch
        %337 = sbr.rel (%p334) target = $region48
      $region47: #{tpu_custom_call.1} parent=5 // pred_region
        %s338 = ssub.s32 %s22, 1
        %p339 = scmp.lt.s32.totalorder %s32, 1
        %s340 = scalar_select %p339, %s32, 1
        %p341 = scmp.lt.s32.totalorder %s33, 0
        %s342 = scalar_select %p341, %s33, 0
        %s343 = sadd.s32 %s342, %s340
        %s344 = smul.addr %s343, 4
        %s345 = scalar_lea.vmem %s0, %s344
        %p346 = pneg %p69
        %p347 = pneg %p66
        %p348 = pneg %p90
        %p349 = pneg %p87
        %p350 = pneg %p111
        %p351 = pneg %p108
        %p352 = pneg %p132
        %p353 = pneg %p129
        %p354 = pneg %p153
        %p355 = pneg %p150
        %p356 = pneg %p174
        %p357 = pneg %p171
        %p358 = pneg %p195
        %p359 = pneg %p192
        %p360 = pneg %p225
        %p361 = pneg %p222
        %s362 = sand.u32 %s212, 1
        %s363 = scalar_lea.sflag [#allocation3], %s362
        %s364 = sand.u32 %s212, 1
        %s365 = smul.addr %s364, 4
        %s366 = scalar_lea.vmem [#allocation2], %s365
        %p367 = pneg %p255
        %p368 = pneg %p252
        %s369 = sand.u32 %s27, 1
        %s370 = scalar_lea.sflag [#allocation5], %s369
        %s371 = sand.u32 %s242, 1
        %s372 = smul.addr %s371, 4
        %s373 = scalar_lea.vmem [#allocation4], %s372
        %p374 = pneg %p285
        %p375 = pneg %p282
        %s376 = sand.u32 %s27, 1
        %s377 = scalar_lea.sflag [#allocation5], %s376
        %s378 = sand.u32 %s272, 1
        %s379 = smul.addr %s378, 4
        %s380 = scalar_lea.vmem [#allocation6], %s379
        %p381 = scmp.lt.s32.totalorder %s32, 1
        %s382 = scalar_select %p381, %s32, 1
        %p383 = scmp.lt.s32.totalorder %s33, 0
        %s384 = scalar_select %p383, %s33, 0
        %s385 = sadd.s32 %s384, %s382
        %s386 = smul.addr %s385, 4
        %s387 = scalar_lea.vmem %s0, %s386
        %v389 = vld [vmem:[%s387] sm:$0xf]
        %s390 = smul.u32 %s34, 4
        %s391 = smul.addr %s390, 4
        %s392 = scalar_lea.vmem %s1, %s391
        %v393 = vld [vmem:[%s392] sm:$0xf]
        %v394 = vld [vmem:[%s392 + $0x4] sm:$0xf]
        %v395 = vld [vmem:[%s392 + $0x8] sm:$0xf]
        %v396 = vld [vmem:[%s392 + $0xc] sm:$0xf]
        %s397 = scalar_lea.vmem %s2, %s34
        %v398 = vld [vmem:[%s397] sm:$0x1]
        %v400 = vperm.slane %v398, 0
        %v406 = vunpack.c.l.b16 %v393
        %v407 = vunpack.c.l.b16 %v394
        %v408 = vunpack.c.l.b16 %v395
        %v409 = vunpack.c.l.b16 %v396
        %v410 = vpack.c.b16 %v407, %v406
        %v411 = vpack.c.b16 %v409, %v408
        %vm414 = vcmask 261120
        %v416 = vsel %vm414, %v389, 0
        %418 = vmatpush.bf16.msra.mxu0 0
        %419 = vmatpush.bf16.msra.mxu0 0
        %420 = vmatpush.bf16.msra.mxu0 0
        %421 = vmatpush.bf16.msra.mxu0 0
        %422 = vmatpush.bf16.msra.mxu0 0
        %423 = vmatpush.bf16.msra.mxu0 0
        %424 = vmatpush.bf16.msra.mxu0 %v411
        %425 = vmatpush.bf16.msra.mxu0 %v410
        %426 = vmatmul.bf16.gmra.mxu0 %v416
        %v427 = vpop.f32.mrf.mxu0
        %v428 = vadd.f32 %v400, %v427
        %v429 = vpop.f32.mrf.mxu0
        %430 = vdwg.mxu0
        %s431 = smul.addr %s390, 4
        %s432 = scalar_lea.vmem %s3, %s431
        %v433 = vld [vmem:[%s432] sm:$0xf]
        %v434 = vld [vmem:[%s432 + $0x4] sm:$0xf]
        %v435 = vld [vmem:[%s432 + $0x8] sm:$0xf]
        %v436 = vld [vmem:[%s432 + $0xc] sm:$0xf]
        %s437 = scalar_lea.vmem %s4, %s34
        %v438 = vld [vmem:[%s437] sm:$0x1]
        %v440 = vperm.slane %v438, 0
        %v446 = vunpack.c.l.b16 %v433
        %v447 = vunpack.c.l.b16 %v434
        %v448 = vunpack.c.l.b16 %v435
        %v449 = vunpack.c.l.b16 %v436
        %v450 = vpack.c.b16 %v447, %v446
        %v451 = vpack.c.b16 %v449, %v448
        %454 = vmatpush.bf16.msra.mxu0 0
        %455 = vmatpush.bf16.msra.mxu0 0
        %456 = vmatpush.bf16.msra.mxu0 0
        %457 = vmatpush.bf16.msra.mxu0 0
        %458 = vmatpush.bf16.msra.mxu0 0
        %459 = vmatpush.bf16.msra.mxu0 0
        %460 = vmatpush.bf16.msra.mxu0 %v451
        %461 = vmatpush.bf16.msra.mxu0 %v450
        %462 = vmatmul.bf16.gmra.mxu0 %v416
        %v463 = vpop.f32.mrf.mxu0
        %v464 = vadd.f32 %v440, %v463
        %v465 = vpop.f32.mrf.mxu0
        %466 = vdwg.mxu0
        %s467 = smul.addr %s390, 4
        %s468 = scalar_lea.vmem %s5, %s467
        %v469 = vld [vmem:[%s468] sm:$0xf]
        %v470 = vld [vmem:[%s468 + $0x4] sm:$0xf]
        %v471 = vld [vmem:[%s468 + $0x8] sm:$0xf]
        %v472 = vld [vmem:[%s468 + $0xc] sm:$0xf]
        %s473 = scalar_lea.vmem %s6, %s34
        %v474 = vld [vmem:[%s473] sm:$0x1]
        %v476 = vperm.slane %v474, 0
        %v482 = vunpack.c.l.b16 %v469
        %v483 = vunpack.c.l.b16 %v470
        %v484 = vunpack.c.l.b16 %v471
        %v485 = vunpack.c.l.b16 %v472
        %v486 = vpack.c.b16 %v483, %v482
        %v487 = vpack.c.b16 %v485, %v484
        %490 = vmatpush.bf16.msra.mxu0 0
        %491 = vmatpush.bf16.msra.mxu0 0
        %492 = vmatpush.bf16.msra.mxu0 0
        %493 = vmatpush.bf16.msra.mxu0 0
        %494 = vmatpush.bf16.msra.mxu0 0
        %495 = vmatpush.bf16.msra.mxu0 0
        %496 = vmatpush.bf16.msra.mxu0 %v487
        %497 = vmatpush.bf16.msra.mxu0 %v486
        %498 = vmatmul.bf16.gmra.mxu0 %v416
        %v499 = vpop.f32.mrf.mxu0
        %v500 = vadd.f32 %v476, %v499
        %v501 = vpop.f32.mrf.mxu0
        %502 = vdwg.mxu0
        %v503 = vpack.c.bf16 %v428, %v428
        %vm504 = vcmask 60416
        %505 = vst.msk [vmem:[%s366] sm:$0xf] %vm504, %v503
        %v506 = vpack.c.bf16 %v464, %v464
        %507 = vst.msk [vmem:[%s373] sm:$0xf] %vm504, %v506
        %v508 = vpack.c.bf16 %v500, %v500
        %509 = vst.msk [vmem:[%s380] sm:$0xf] %vm504, %v508
        %s510 = sand.u32 %s212, 1
        %s511 = scalar_lea.sflag [#allocation3], %s510
        %s512 = sand.u32 %s212, 1
        %s513 = smul.addr %s512, 4
        %s514 = scalar_lea.vmem [#allocation2], %s513
        %s515 = sand.u32 %s27, 1
        %s516 = scalar_lea.sflag [#allocation5], %s515
        %s517 = sand.u32 %s242, 1
        %s518 = smul.addr %s517, 4
        %s519 = scalar_lea.vmem [#allocation4], %s518
        %s520 = sand.u32 %s27, 1
        %s521 = scalar_lea.sflag [#allocation5], %s520
        %s522 = sand.u32 %s272, 1
        %s523 = smul.addr %s522, 4
        %s524 = scalar_lea.vmem [#allocation6], %s523
        // Predicated region
        $region49: #{tpu_custom_call.1} parent=47 // pred_check
          %p525 = pneg %p222
        $region50: #{tpu_custom_call.1} parent=47 // pred_check_branch
          %527 = sbr.rel (%p525) target = $region52
        $region51: #{tpu_custom_call.1} parent=47 // pred_region
          %529 = vsyncadd %s511, 0
          %s530 = sadd.s32 %s33, %s34
          %s531 = smul.addr %s32, 4
          %s532 = sadd.s32 %s530, %s531
          %s533 = smul.addr %s532, 4
          %s534 = scalar_lea.hbm %s7, %s533
          %s536 = sshll.u32 %s514, 4
          %s537 = int_to_ptr.vmem [resolvable:$true] %s536
          %s538 = sshll.u32 %s534, 4
          %s539 = int_to_ptr.hbm [resolvable:$true] %s538
          %541 = dma.vmem_to_hbm [thread:$0]  %s537, 64, %s539, %s511
        $region52: #{tpu_custom_call.1} parent=47 // pred_fallthru
          _
        // Predicated region
        $region53: #{tpu_custom_call.1} parent=47 // pred_check
          %p542 = pneg %p252
        $region54: #{tpu_custom_call.1} parent=47 // pred_check_branch
          %544 = sbr.rel (%p542) target = $region56
        $region55: #{tpu_custom_call.1} parent=47 // pred_region
          %546 = vsyncadd %s516, 0
          %s547 = sadd.s32 %s33, %s34
          %s548 = smul.addr %s32, 4
          %s549 = sadd.s32 %s547, %s548
          %s550 = smul.addr %s549, 4
          %s551 = scalar_lea.hbm %s8, %s550
          %s553 = sshll.u32 %s519, 4
          %s554 = int_to_ptr.vmem [resolvable:$true] %s553
          %s555 = sshll.u32 %s551, 4
          %s556 = int_to_ptr.hbm [resolvable:$true] %s555
          %558 = dma.vmem_to_hbm [thread:$0]  %s554, 64, %s556, %s516
        $region56: #{tpu_custom_call.1} parent=47 // pred_fallthru
          _
        // Predicated region
        $region57: #{tpu_custom_call.1} parent=47 // pred_check
          %p559 = pneg %p282
        $region58: #{tpu_custom_call.1} parent=47 // pred_check_branch
          %561 = sbr.rel (%p559) target = $region60
        $region59: #{tpu_custom_call.1} parent=47 // pred_region
          %563 = vsyncadd %s521, 0
          %s564 = sadd.s32 %s33, %s34
          %s565 = smul.addr %s32, 4
          %s566 = sadd.s32 %s564, %s565
          %s567 = smul.addr %s566, 4
          %s568 = scalar_lea.hbm %s9, %s567
          %s570 = sshll.u32 %s524, 4
          %s571 = int_to_ptr.vmem [resolvable:$true] %s570
          %s572 = sshll.u32 %s568, 4
          %s573 = int_to_ptr.hbm [resolvable:$true] %s572
          %575 = dma.vmem_to_hbm [thread:$0]  %s571, 64, %s573, %s521
        $region60: #{tpu_custom_call.1} parent=47 // pred_fallthru
          _
      $region48: #{tpu_custom_call.1} parent=5 // pred_fallthru
        _
      %p576 = scmp.le.s32.totalorder 2, %s22
      // Predicated region
      $region61: #{tpu_custom_call.1} parent=5 // pred_check
        %p577 = pneg %p576
      $region62: #{tpu_custom_call.1} parent=5 // pred_check_branch
        %579 = sbr.rel (%p577) target = $region64
      $region63: #{tpu_custom_call.1} parent=5 // pred_region
        %s580 = ssub.s32 %s22, 2
        // Predicated region
        $region65: #{tpu_custom_call.1} parent=63 // pred_check
          %p581 = pneg %p228
        $region66: #{tpu_custom_call.1} parent=63 // pred_check_branch
          %583 = sbr.rel (%p581) target = $region68
        $region67: #{tpu_custom_call.1} parent=63 // pred_region
          %s584 = sand.u32 %s213, 1
          %s585 = scalar_lea.sflag [#allocation3], %s584
          %s586 = sand.u32 %s213, 1
          %s587 = smul.addr %s586, 4
          %s588 = scalar_lea.vmem [#allocation2], %s587
          %590 = dma.done %s585, 64
        $region68: #{tpu_custom_call.1} parent=63 // pred_fallthru
          _
        // Predicated region
        $region69: #{tpu_custom_call.1} parent=63 // pred_check
          %p591 = pneg %p258
        $region70: #{tpu_custom_call.1} parent=63 // pred_check_branch
          %593 = sbr.rel (%p591) target = $region72
        $region71: #{tpu_custom_call.1} parent=63 // pred_region
          %s594 = sand.u32 %s28, 1
          %s595 = scalar_lea.sflag [#allocation5], %s594
          %s596 = sand.u32 %s243, 1
          %s597 = smul.addr %s596, 4
          %s598 = scalar_lea.vmem [#allocation4], %s597
          %600 = dma.done %s595, 64
        $region72: #{tpu_custom_call.1} parent=63 // pred_fallthru
          _
        // Predicated region
        $region73: #{tpu_custom_call.1} parent=63 // pred_check
          %p601 = pneg %p288
        $region74: #{tpu_custom_call.1} parent=63 // pred_check_branch
          %603 = sbr.rel (%p601) target = $region76
        $region75: #{tpu_custom_call.1} parent=63 // pred_region
          %s604 = sand.u32 %s28, 1
          %s605 = scalar_lea.sflag [#allocation5], %s604
          %s606 = sand.u32 %s273, 1
          %s607 = smul.addr %s606, 4
          %s608 = scalar_lea.vmem [#allocation6], %s607
          %610 = dma.done %s605, 64
        $region76: #{tpu_custom_call.1} parent=63 // pred_fallthru
          _
      $region64: #{tpu_custom_call.1} parent=5 // pred_fallthru
        _
    $region6: #{tpu_custom_call.1} parent=1 // loop_footer
      %s26 = sadd.s32 1, %s22
    $region7: #{tpu_custom_call.1} parent=1 // loop_footer_branch
      %21 = sbr.rel target = $region3
    $region8: #{tpu_custom_call.1} parent=1 // loop_exit
      _
    %611 = vsyncpa [#allocation3], 1
    %s612 = scalar_lea.sflag [#allocation3], 1
    %613 = vsyncpa %s612, 1
    %614 = vsyncpa [#allocation5], 1
    %s615 = scalar_lea.sflag [#allocation5], 1
    %616 = vsyncpa %s615, 1

</llo_original>
